<compile_context>
chip_gen: v7x
topology: tpu7x:2x2x1
jax: 0.10.0
libtpu: 0.0.40
codegen_flags: <defaults>
</compile_context>

<pallas_src>
import jax
import jax.numpy as jnp
from jax.experimental import pallas as pl
from jax.experimental.pallas import tpu as pltpu


def _numerical_embedder_kernel(x_ref, e_ref, w_ref, b_ref, o_ref):
    # x_ref: (TB, N) f32   e_ref: (N, N*D) bf16 0/1
    # w_ref/b_ref: (1, N*D) f32             o_ref: (TB, N*D) out_dtype
    #
    # Expand x[b, n] across the D lanes of feature n on the MXU.  E is cast to
    # f32 so the dot uses the f32 x f32 HIGHEST path: x is decomposed into bf16
    # components, each multiplied by an exact 0/1, so x_exp == broadcast(x)
    # bit-exactly for normal-range f32.  Do NOT relax precision to DEFAULT.
    x_exp = jnp.dot(
        x_ref[...],
        e_ref[...].astype(jnp.float32),
        preferred_element_type=jnp.float32,
        precision=jax.lax.Precision.HIGHEST,
    )                                                          # (TB, N*D) f32
    # One multiply-add per output element on the VPU; (1, N*D) params
    # sublane-broadcast across the tile.
    o_ref[...] = (x_exp * w_ref[...] + b_ref[...]).astype(o_ref.dtype)


def numerical_embedder(x, weights, biases, *, block_b=None, out_dtype=None,
                       vmem_limit_bytes=None):
    """x: (B, N), weights/biases: (N, D)  ->  (B, N, D)."""
    B, N = x.shape
    N_w, D = weights.shape
    assert N == N_w and biases.shape == (N, D)
    ND = N * D
    # Lane-dense unmasked stores require the flattened feature axis to fill
    # whole 128-lane registers.
    assert ND % 128 == 0, f"N*D={ND} must be a multiple of 128 for lane-dense stores"
    # TODO(synk): pad D so that N*D % 128 == 0 (and slice after the reshape) to
    # support arbitrary (N, D) without masked partial stores.

    if out_dtype is None:
        out_dtype = jnp.bfloat16       # write-bound kernel: halve output bytes
    out_itemsize = jnp.dtype(out_dtype).itemsize
    x_itemsize = jnp.dtype(x.dtype).itemsize
    param_itemsize = jnp.dtype(weights.dtype).itemsize
    sub = max(8, 32 // out_itemsize)   # sublane tile: 8 f32 / 16 bf16 / 32 int8-fp8

    # Flat, lane-dense parameters (one-time, free row-major reshapes).
    w_flat = weights.reshape(1, ND)
    b_flat = biases.reshape(1, ND)
    # Constant 0/1 expansion matrix, stored in bf16 (exact): E[n, n*D + d] = 1.
    expand = jnp.repeat(jnp.eye(N, dtype=jnp.bfloat16), D, axis=1)   # (N, N*D)

    row_out_bytes = ND * out_itemsize
    # Per-batch-row VMEM: double-buffered output + materialized f32 MXU
    # intermediate (x_exp cannot live in 64 vregs) + double-buffered x rows.
    per_row_vmem = 2 * row_out_bytes + 4 * ND + 2 * x_itemsize * N
    # Grid-invariant residents (E bf16 + W/B), double-buffered by the pipeline.
    fixed_vmem = 2 * (N * ND * 2 + 2 * ND * param_itemsize)

    if block_b is None:
        budget = 40 * 1024 * 1024                      # fits v7x's 64 MiB VMEM
        max_rows_vmem = max(sub, (budget - fixed_vmem) // per_row_vmem)
        target_rows = max(sub, (8 * 1024 * 1024) // max(1, row_out_bytes))
        block_b = min(target_rows, max_rows_vmem)
        if B > sub:
            # Never collapse the grid to 1: keep >= 2 "parallel" steps so both
            # v7x TensorCores get work (no-op on single-TC v5e/v6e).
            block_b = min(block_b, pl.cdiv(B, 2))
    block_b = int(min(block_b, B))
    if block_b < B:
        block_b = max(sub, (block_b // sub) * sub)     # unmasked sublane tiles

    grid = (pl.cdiv(B, block_b),)

    if vmem_limit_bytes is None:
        needed = (2 * block_b * row_out_bytes          # double-buffered out tile
                  + block_b * ND * 4                   # f32 x_exp intermediate
                  + 2 * block_b * N * x_itemsize       # double-buffered x tile
                  + fixed_vmem)                        # E + W + B
        vmem_limit_bytes = int(min(max(needed * 5 // 4, 32 * 1024 * 1024),
                                   56 * 1024 * 1024))

    out2d = pl.pallas_call(
        _numerical_embedder_kernel,
        out_shape=jax.ShapeDtypeStruct((B, ND), out_dtype),
        grid=grid,
        in_specs=[
            pl.BlockSpec((block_b, N), lambda i: (i, 0)),   # x tile (pipelined)
            pl.BlockSpec((N, ND), lambda i: (0, 0)),        # E (grid-invariant)
            pl.BlockSpec((1, ND), lambda i: (0, 0)),        # weights (resident)
            pl.BlockSpec((1, ND), lambda i: (0, 0)),        # biases  (resident)
        ],
        out_specs=pl.BlockSpec((block_b, ND), lambda i: (i, 0)),
        # TODO(synk): if xprof shows exposed output writeback DMA after tile
        # sizing, try pipeline_mode=pl.Buffered(3) on out_specs (budget
        # permitting).
        compiler_params=pltpu.CompilerParams(
            dimension_semantics=("parallel",),
            vmem_limit_bytes=vmem_limit_bytes),
    )(x, expand, w_flat, b_flat)

    # Row-major (B, N*D) -> (B, N, D) is a metadata-only reshape.
    return out2d.reshape(B, N, D)


def reference(x, weights, biases):
    return x[:, :, None] * weights[None, :, :] + biases[None, :, :]


if __name__ == "__main__":
    # Mirrors nn.Parameter(torch.randn(...)) init at small shapes.
    dim = 32                   # D (embedding dim)
    num_numerical_types = 8    # N (number of numerical features)
    batch = 4                  # B

    key = jax.random.PRNGKey(0)
    k_w, k_b, k_x = jax.random.split(key, 3)
    weights = jax.random.normal(k_w, (num_numerical_types, dim), dtype=jnp.float32)
    biases = jax.random.normal(k_b, (num_numerical_types, dim), dtype=jnp.float32)
    x = jax.random.normal(k_x, (batch, num_numerical_types), dtype=jnp.float32)

    ref = reference(x, weights, biases)

    # fp32 path: reproduces the PyTorch module's fp32 math (exact 0/1 MXU
    # expansion under HIGHEST precision).
    out_f32 = jax.block_until_ready(
        numerical_embedder(x, weights, biases, out_dtype=jnp.float32))
    assert out_f32.shape == (batch, num_numerical_types, dim)
    assert out_f32.dtype == jnp.float32
    assert jnp.allclose(out_f32, ref, atol=1e-6, rtol=1e-6), float(
        jnp.max(jnp.abs(out_f32 - ref)))

    # Default (recommended) bf16-output path: kernel is HBM-write bound, so
    # halving output bytes is ~2x wall clock on every TPU generation.
    out_bf16 = jax.block_until_ready(numerical_embedder(x, weights, biases))
    assert out_bf16.shape == (batch, num_numerical_types, dim)
    assert out_bf16.dtype == jnp.bfloat16
    assert jnp.allclose(out_bf16.astype(jnp.float32), ref, atol=5e-2, rtol=5e-2), float(
        jnp.max(jnp.abs(out_bf16.astype(jnp.float32) - ref)))

    print("KERNEL_OK")
</pallas_src>

<mosaic_0001>
module attributes {stable_mosaic.version = 11 : i64} {
  func.func @_numerical_embedder_kernel(%arg0: i32, %arg1: memref<4x8xf32, #tpu.memory_space<vmem>>, %arg2: memref<8x256xbf16, #tpu.memory_space<vmem>>, %arg3: memref<1x256xf32, #tpu.memory_space<vmem>>, %arg4: memref<1x256xf32, #tpu.memory_space<vmem>>, %arg5: memref<4x256xf32, #tpu.memory_space<vmem>>) attributes {dimension_semantics = [#tpu.dimension_semantics<parallel>], iteration_bounds = array<i64: 1>, scalar_prefetch = 0 : i64, scratch_operands = 0 : i64, tpu.core_type = #tpu.core_type<tc>, window_params = [{transform_indices = @transform_0, window_bounds = array<i64: 4, 8>}, {pipeline_mode = #tpu.pipeline_mode<synchronous>, transform_indices = @transform_1, window_bounds = array<i64: 8, 256>}, {pipeline_mode = #tpu.pipeline_mode<synchronous>, transform_indices = @transform_2, window_bounds = array<i64: 1, 256>}, {pipeline_mode = #tpu.pipeline_mode<synchronous>, transform_indices = @transform_3, window_bounds = array<i64: 1, 256>}, {transform_indices = @transform_4, window_bounds = array<i64: 4, 256>}]} {
    %c0 = arith.constant 0 : index
    %c0_0 = arith.constant 0 : index
    %0 = vector.load %arg1[%c0, %c0_0] : memref<4x8xf32, #tpu.memory_space<vmem>>, vector<4x8xf32>
    %c0_1 = arith.constant 0 : index
    %c0_2 = arith.constant 0 : index
    %1 = vector.load %arg2[%c0_1, %c0_2] : memref<8x256xbf16, #tpu.memory_space<vmem>>, vector<8x256xbf16>
    %2 = arith.extf %1 : vector<8x256xbf16> to vector<8x256xf32>
    %cst = arith.constant dense<0.000000e+00> : vector<4x256xf32>
    %3 = tpu.matmul %0, %2, %cst {dimension_numbers = #tpu.dot_dimension_numbers<[1], [0], [0], [1], [0, 0, 1, 1], [], []>, precision = #tpu.contract_precision<fp32>} : vector<4x8xf32>, vector<8x256xf32>, vector<4x256xf32> -> vector<4x256xf32>
    %c0_3 = arith.constant 0 : index
    %c0_4 = arith.constant 0 : index
    %4 = vector.load %arg3[%c0_3, %c0_4] : memref<1x256xf32, #tpu.memory_space<vmem>>, vector<1x256xf32>
    %5 = vector.broadcast %4 : vector<1x256xf32> to vector<4x256xf32>
    %6 = arith.mulf %3, %5 : vector<4x256xf32>
    %c0_5 = arith.constant 0 : index
    %c0_6 = arith.constant 0 : index
    %7 = vector.load %arg4[%c0_5, %c0_6] : memref<1x256xf32, #tpu.memory_space<vmem>>, vector<1x256xf32>
    %8 = vector.broadcast %7 : vector<1x256xf32> to vector<4x256xf32>
    %9 = arith.addf %6, %8 : vector<4x256xf32>
    %c0_7 = arith.constant 0 : index
    %c0_8 = arith.constant 0 : index
    %10 = vector.load %arg5[%c0_7, %c0_8] : memref<4x256xf32, #tpu.memory_space<vmem>>, vector<4x256xf32>
    tpu.vector_store %arg5[%c0_7, %c0_8], %9 {strides = array<i32>} : memref<4x256xf32, #tpu.memory_space<vmem>>, vector<4x256xf32>,
    return
  }
  func.func @transform_0(%arg0: i32) -> (i32, i32) {
    %c0_i32 = arith.constant 0 : i32
    %c0_i32_0 = arith.constant 0 : i32
    return %arg0, %c0_i32 : i32, i32
  }
  func.func @transform_1(%arg0: i32) -> (i32, i32) {
    %c0_i32 = arith.constant 0 : i32
    %c0_i32_0 = arith.constant 0 : i32
    %c0_i32_1 = arith.constant 0 : i32
    return %c0_i32, %c0_i32_0 : i32, i32
  }
  func.func @transform_2(%arg0: i32) -> (i32, i32) {
    %c0_i32 = arith.constant 0 : i32
    %c0_i32_0 = arith.constant 0 : i32
    %c0_i32_1 = arith.constant 0 : i32
    return %c0_i32, %c0_i32_0 : i32, i32
  }
  func.func @transform_3(%arg0: i32) -> (i32, i32) {
    %c0_i32 = arith.constant 0 : i32
    %c0_i32_0 = arith.constant 0 : i32
    %c0_i32_1 = arith.constant 0 : i32
    return %c0_i32, %c0_i32_0 : i32, i32
  }
  func.func @transform_4(%arg0: i32) -> (i32, i32) {
    %c0_i32 = arith.constant 0 : i32
    %c0_i32_0 = arith.constant 0 : i32
    return %arg0, %c0_i32 : i32, i32
  }
}

</mosaic_0001>

<llo_original>
// kernel: tpu_custom_call.1
$region0: #{tpu_custom_call.1}
  #allocation0 [shape = 'u32[]', space=smem, size = 0x4, offset = 0x4, fixed_abs, tag = 'smem constant byte address 0x4 - core index']
  #allocation1 [shape = 'u32[144,128]{1,0:T(1,128)}', space=vmem, size = 0x12000, scoped, tag = 'internal scratch']
  %s0 = inlined_call_operand.hbm [shape: f32[4,8], index: 0, kind: input, shape index: {}]
  %s1 = inlined_call_operand.hbm [shape: bf16[8,256], index: 1, kind: input, shape index: {}]
  %s2 = inlined_call_operand.vmem [shape: f32[1,256], index: 2, kind: input, shape index: {}]
  %s3 = inlined_call_operand.vmem [shape: f32[1,256], index: 3, kind: input, shape index: {}]
  %s4 = inlined_call_operand.hbm [shape: f32[4,256], index: 4, kind: output, shape index: {}]
  %s5 = sld [smem:[#allocation0]]
  $region34: #{tpu_custom_call.1} parent=0
    _
  %s7 = ssub.s32 1, %s5
  %s8 = scalar_select 0, %s7, %s5
  $region1: #{tpu_custom_call.1} parent=0
    #allocation2 [shape = 'u8[2048]{0}', space=vmem, size = 0x800, scoped, tag = 'input window, operand 0, single buffered']
    #allocation3 [shape = 's32[1]{0}', space=sflag, size = 0x4, scoped, tag = 'scoped memory for tpu_custom_call.1']
    #allocation4 [shape = 's32[1]{0}', space=sflag, size = 0x4, scoped, tag = 'scoped memory for tpu_custom_call.1']
    #allocation5 [shape = 'u8[4096]{0}', space=vmem, size = 0x1000, scoped, tag = 'input window, operand 1, single buffered']
    #allocation6 [shape = 's32[1]{0}', space=sflag, size = 0x4, scoped, tag = 'scoped memory for tpu_custom_call.1']
    #allocation7 [shape = 'u8[4096]{0}', space=vmem, size = 0x1000, scoped, tag = 'output window, operand 0, single buffered']
    %9 = vsyncpa [#allocation3], 0
    %10 = vsyncpa [#allocation6], 0
    %11 = vsyncpa [#allocation4], 0
    // Predicated region
    $region2: #{tpu_custom_call.1} parent=1 // pred_check
      _
    $region3: #{tpu_custom_call.1} parent=1 // pred_check_branch
      %13 = sbr.rel (0) target = $region5
    $region4: #{tpu_custom_call.1} parent=1 // pred_region
      %s15 = ssub.s32 64, 64
      %16 = vsyncadd [#allocation3], %s15
      %s18 = sshll.u32 [#allocation2], 4
      %s19 = int_to_ptr.vmem [resolvable:$true] %s18
      %21 = dma.hbm_to_vmem [thread:$0]  %s0, 64, %s19, [#allocation3]
    $region5: #{tpu_custom_call.1} parent=1 // pred_fallthru
      _
    // Predicated region
    $region6: #{tpu_custom_call.1} parent=1 // pred_check
      _
    $region7: #{tpu_custom_call.1} parent=1 // pred_check_branch
      %23 = sbr.rel (0) target = $region9
    $region8: #{tpu_custom_call.1} parent=1 // pred_region
      %s25 = ssub.s32 128, 128
      %26 = vsyncadd [#allocation6], %s25
      %s28 = sshll.u32 [#allocation5], 4
      %s29 = int_to_ptr.vmem [resolvable:$true] %s28
      %31 = dma.hbm_to_vmem [thread:$0]  %s1, 128, %s29, [#allocation6]
    $region9: #{tpu_custom_call.1} parent=1 // pred_fallthru
      _
    // Predicated region
    $region10: #{tpu_custom_call.1} parent=1 // pred_check
      _
    $region11: #{tpu_custom_call.1} parent=1 // pred_check_branch
      %33 = sbr.rel (0) target = $region13
    $region12: #{tpu_custom_call.1} parent=1 // pred_region
      _
    $region13: #{tpu_custom_call.1} parent=1 // pred_fallthru
      _
    // Predicated region
    $region14: #{tpu_custom_call.1} parent=1 // pred_check
      _
    $region15: #{tpu_custom_call.1} parent=1 // pred_check_branch
      %35 = sbr.rel (0) target = $region17
    $region16: #{tpu_custom_call.1} parent=1 // pred_region
      _
    $region17: #{tpu_custom_call.1} parent=1 // pred_fallthru
      _
    // Predicated region
    $region18: #{tpu_custom_call.1} parent=1 // pred_check
      _
    $region19: #{tpu_custom_call.1} parent=1 // pred_check_branch
      %37 = sbr.rel (0) target = $region21
    $region20: #{tpu_custom_call.1} parent=1 // pred_region
      %38 = dma.done [#allocation3], 64
    $region21: #{tpu_custom_call.1} parent=1 // pred_fallthru
      _
    // Predicated region
    $region22: #{tpu_custom_call.1} parent=1 // pred_check
      _
    $region23: #{tpu_custom_call.1} parent=1 // pred_check_branch
      %40 = sbr.rel (0) target = $region25
    $region24: #{tpu_custom_call.1} parent=1 // pred_region
      %41 = dma.done [#allocation6], 128
    $region25: #{tpu_custom_call.1} parent=1 // pred_fallthru
      _
    %v42 = vld [vmem:[#allocation2] sm:$0xf]
    %v43 = vld [vmem:[#allocation5] sm:$0xff]
    %v44 = vunpack.c.l.bf16 %v43
    %v45 = vunpack.c.h.bf16 %v43
    %vm46 = vcmask 64512
    %v48 = vsel %vm46, %v42, 0
    %50 = vmatprep.subr.mxu0 %v45
    %51 = vmatpush1.msra.mxu0 %v44
    %52 = vmatprep.subr.mxu0 0.0
    %53 = vmatpush1.msra.mxu0 0.0
    %54 = vmatprep.subr.mxu0 0.0
    %55 = vmatpush1.msra.mxu0 0.0
    %56 = vmatprep.subr.mxu0 0.0
    %57 = vmatpush1.msra.mxu0 0.0
    %58 = vmatprep.subr.mxu0 0.0
    %59 = vmatpush1.msra.mxu0 0.0
    %60 = vmatprep.subr.mxu0 0.0
    %61 = vmatpush1.msra.mxu0 0.0
    %62 = vmatprep.subr.mxu0 0.0
    %63 = vmatpush1.msra.mxu0 0.0
    %64 = vmatprep.subr.mxu0 0.0
    %65 = vmatpush1.msra.mxu0 0.0
    %66 = vmatprep.subr.mxu0 0.0
    %67 = vmatpush1.msra.mxu0 0.0
    %68 = vmatprep.subr.mxu0 0.0
    %69 = vmatpush1.msra.mxu0 0.0
    %70 = vmatprep.subr.mxu0 0.0
    %71 = vmatpush1.msra.mxu0 0.0
    %72 = vmatprep.subr.mxu0 0.0
    %73 = vmatpush1.msra.mxu0 0.0
    %74 = vmatprep.subr.mxu0 0.0
    %75 = vmatpush1.msra.mxu0 0.0
    %76 = vmatprep.subr.mxu0 0.0
    %77 = vmatpush1.msra.mxu0 0.0
    %78 = vmatprep.subr.mxu0 0.0
    %79 = vmatpush1.msra.mxu0 0.0
    %80 = vmatprep.subr.mxu0 0.0
    %81 = vmatpush1.msra.mxu0 0.0
    %82 = vmatprep.subr.mxu0 0.0
    %83 = vmatpush1.msra.mxu0 0.0
    %84 = vmatprep.subr.mxu0 0.0
    %85 = vmatpush1.msra.mxu0 0.0
    %86 = vmatprep.subr.mxu0 0.0
    %87 = vmatpush1.msra.mxu0 0.0
    %88 = vmatprep.subr.mxu0 0.0
    %89 = vmatpush1.msra.mxu0 0.0
    %90 = vmatprep.subr.mxu0 0.0
    %91 = vmatpush1.msra.mxu0 0.0
    %92 = vmatprep.subr.mxu0 0.0
    %93 = vmatpush1.msra.mxu0 0.0
    %94 = vmatprep.subr.mxu0 0.0
    %95 = vmatpush1.msra.mxu0 0.0
    %96 = vmatprep.subr.mxu0 0.0
    %97 = vmatpush1.msra.mxu0 0.0
    %98 = vmatprep.subr.mxu0 0.0
    %99 = vmatpush1.msra.mxu0 0.0
    %100 = vmatprep.subr.mxu0 0.0
    %101 = vmatpush1.msra.mxu0 0.0
    %102 = vmatprep.subr.mxu0 0.0
    %103 = vmatpush1.msra.mxu0 0.0
    %104 = vmatprep.subr.mxu0 0.0
    %105 = vmatpush1.msra.mxu0 0.0
    %106 = vmatprep.subr.mxu0 0.0
    %107 = vmatpush1.msra.mxu0 0.0
    %108 = vmatprep.subr.mxu0 0.0
    %109 = vmatpush1.msra.mxu0 0.0
    %110 = vmatprep.subr.mxu0 0.0
    %111 = vmatpush1.msra.mxu0 0.0
    %112 = vmatprep.subr.mxu0 0.0
    %113 = vmatpush1.msra.mxu0 0.0
    %114 = vmatprep.mubr.f32.mxu0 0.0
    %v115 = vand.u32 %v48, 4294901760
    %v116 = vsub.f32 %v48, %v115
    %v117 = vand.u32 %v116, 4294901760
    %v118 = vsub.f32 %v116, %v117
    %v119 = vand.u32 %v118, 4294901760
    %120 = vmatmul.mubr.f32.gmra.mrb[0].mxu0 %v119
    %v121 = vpop.f32.mrb[0].mxu0
    %v122 = vadd.f32 0.0, %v121
    %v123 = vpop.f32.mrb[0].mxu0
    %v124 = vadd.f32 0.0, %v123
    %125 = vdwg.mxu0
    %v126 = vsub.f32 %v45, %v45
    %v127 = vand.u32 %v126, 4294901760
    %v128 = vsub.f32 %v126, %v127
    %v129 = vand.u32 %v128, 4294901760
    %130 = vmatprep.subr.mxu0 %v129
    %v131 = vsub.f32 %v44, %v44
    %v132 = vand.u32 %v131, 4294901760
    %v133 = vsub.f32 %v131, %v132
    %v134 = vand.u32 %v133, 4294901760
    %135 = vmatpush1.msra.mxu0 %v134
    %136 = vmatprep.subr.mxu0 0.0
    %137 = vmatpush1.msra.mxu0 0.0
    %138 = vmatprep.subr.mxu0 0.0
    %139 = vmatpush1.msra.mxu0 0.0
    %140 = vmatprep.subr.mxu0 0.0
    %141 = vmatpush1.msra.mxu0 0.0
    %142 = vmatprep.subr.mxu0 0.0
    %143 = vmatpush1.msra.mxu0 0.0
    %144 = vmatprep.subr.mxu0 0.0
    %145 = vmatpush1.msra.mxu0 0.0
    %146 = vmatprep.subr.mxu0 0.0
    %147 = vmatpush1.msra.mxu0 0.0
    %148 = vmatprep.subr.mxu0 0.0
    %149 = vmatpush1.msra.mxu0 0.0
    %150 = vmatprep.subr.mxu0 0.0
    %151 = vmatpush1.msra.mxu0 0.0
    %152 = vmatprep.subr.mxu0 0.0
    %153 = vmatpush1.msra.mxu0 0.0
    %154 = vmatprep.subr.mxu0 0.0
    %155 = vmatpush1.msra.mxu0 0.0
    %156 = vmatprep.subr.mxu0 0.0
    %157 = vmatpush1.msra.mxu0 0.0
    %158 = vmatprep.subr.mxu0 0.0
    %159 = vmatpush1.msra.mxu0 0.0
    %160 = vmatprep.subr.mxu0 0.0
    %161 = vmatpush1.msra.mxu0 0.0
    %162 = vmatprep.subr.mxu0 0.0
    %163 = vmatpush1.msra.mxu0 0.0
    %164 = vmatprep.subr.mxu0 0.0
    %165 = vmatpush1.msra.mxu0 0.0
    %166 = vmatprep.subr.mxu0 0.0
    %167 = vmatpush1.msra.mxu0 0.0
    %168 = vmatprep.subr.mxu0 0.0
    %169 = vmatpush1.msra.mxu0 0.0
    %170 = vmatprep.subr.mxu0 0.0
    %171 = vmatpush1.msra.mxu0 0.0
    %172 = vmatprep.subr.mxu0 0.0
    %173 = vmatpush1.msra.mxu0 0.0
    %174 = vmatprep.subr.mxu0 0.0
    %175 = vmatpush1.msra.mxu0 0.0
    %176 = vmatprep.subr.mxu0 0.0
    %177 = vmatpush1.msra.mxu0 0.0
    %178 = vmatprep.subr.mxu0 0.0
    %179 = vmatpush1.msra.mxu0 0.0
    %180 = vmatprep.subr.mxu0 0.0
    %181 = vmatpush1.msra.mxu0 0.0
    %182 = vmatprep.subr.mxu0 0.0
    %183 = vmatpush1.msra.mxu0 0.0
    %184 = vmatprep.subr.mxu0 0.0
    %185 = vmatpush1.msra.mxu0 0.0
    %186 = vmatprep.subr.mxu0 0.0
    %187 = vmatpush1.msra.mxu0 0.0
    %188 = vmatprep.subr.mxu0 0.0
    %189 = vmatpush1.msra.mxu0 0.0
    %190 = vmatprep.subr.mxu0 0.0
    %191 = vmatpush1.msra.mxu0 0.0
    %192 = vmatprep.subr.mxu0 0.0
    %193 = vmatpush1.msra.mxu0 0.0
    %194 = vmatprep.subr.mxu0 0.0
    %195 = vmatpush1.msra.mxu0 0.0
    %196 = vmatprep.subr.mxu0 0.0
    %197 = vmatpush1.msra.mxu0 0.0
    %198 = vmatprep.mubr.f32.mxu0 0.0
    %v199 = vand.u32 %v48, 4294901760
    %200 = vmatmul.mubr.f32.gmra.mrb[0].mxu0 %v199
    %v201 = vpop.f32.mrb[0].mxu0
    %v202 = vadd.f32 %v122, %v201
    %v203 = vpop.f32.mrb[0].mxu0
    %v204 = vadd.f32 %v124, %v203
    %205 = vdwg.mxu0
    %v206 = vsub.f32 %v45, %v45
    %207 = vmatprep.subr.mxu0 %v206
    %v208 = vsub.f32 %v44, %v44
    %209 = vmatpush1.msra.mxu0 %v208
    %210 = vmatprep.subr.mxu0 0.0
    %211 = vmatpush1.msra.mxu0 0.0
    %212 = vmatprep.subr.mxu0 0.0
    %213 = vmatpush1.msra.mxu0 0.0
    %214 = vmatprep.subr.mxu0 0.0
    %215 = vmatpush1.msra.mxu0 0.0
    %216 = vmatprep.subr.mxu0 0.0
    %217 = vmatpush1.msra.mxu0 0.0
    %218 = vmatprep.subr.mxu0 0.0
    %219 = vmatpush1.msra.mxu0 0.0
    %220 = vmatprep.subr.mxu0 0.0
    %221 = vmatpush1.msra.mxu0 0.0
    %222 = vmatprep.subr.mxu0 0.0
    %223 = vmatpush1.msra.mxu0 0.0
    %224 = vmatprep.subr.mxu0 0.0
    %225 = vmatpush1.msra.mxu0 0.0
    %226 = vmatprep.subr.mxu0 0.0
    %227 = vmatpush1.msra.mxu0 0.0
    %228 = vmatprep.subr.mxu0 0.0
    %229 = vmatpush1.msra.mxu0 0.0
    %230 = vmatprep.subr.mxu0 0.0
    %231 = vmatpush1.msra.mxu0 0.0
    %232 = vmatprep.subr.mxu0 0.0
    %233 = vmatpush1.msra.mxu0 0.0
    %234 = vmatprep.subr.mxu0 0.0
    %235 = vmatpush1.msra.mxu0 0.0
    %236 = vmatprep.subr.mxu0 0.0
    %237 = vmatpush1.msra.mxu0 0.0
    %238 = vmatprep.subr.mxu0 0.0
    %239 = vmatpush1.msra.mxu0 0.0
    %240 = vmatprep.subr.mxu0 0.0
    %241 = vmatpush1.msra.mxu0 0.0
    %242 = vmatprep.subr.mxu0 0.0
    %243 = vmatpush1.msra.mxu0 0.0
    %244 = vmatprep.subr.mxu0 0.0
    %245 = vmatpush1.msra.mxu0 0.0
    %246 = vmatprep.subr.mxu0 0.0
    %247 = vmatpush1.msra.mxu0 0.0
    %248 = vmatprep.subr.mxu0 0.0
    %249 = vmatpush1.msra.mxu0 0.0
    %250 = vmatprep.subr.mxu0 0.0
    %251 = vmatpush1.msra.mxu0 0.0
    %252 = vmatprep.subr.mxu0 0.0
    %253 = vmatpush1.msra.mxu0 0.0
    %254 = vmatprep.subr.mxu0 0.0
    %255 = vmatpush1.msra.mxu0 0.0
    %256 = vmatprep.subr.mxu0 0.0
    %257 = vmatpush1.msra.mxu0 0.0
    %258 = vmatprep.subr.mxu0 0.0
    %259 = vmatpush1.msra.mxu0 0.0
    %260 = vmatprep.subr.mxu0 0.0
    %261 = vmatpush1.msra.mxu0 0.0
    %262 = vmatprep.subr.mxu0 0.0
    %263 = vmatpush1.msra.mxu0 0.0
    %264 = vmatprep.subr.mxu0 0.0
    %265 = vmatpush1.msra.mxu0 0.0
    %266 = vmatprep.subr.mxu0 0.0
    %267 = vmatpush1.msra.mxu0 0.0
    %268 = vmatprep.subr.mxu0 0.0
    %269 = vmatpush1.msra.mxu0 0.0
    %270 = vmatprep.subr.mxu0 0.0
    %271 = vmatpush1.msra.mxu0 0.0
    %272 = vmatprep.mubr.f32.mxu0 0.0
    %v273 = vand.u32 %v48, 4294901760
    %v274 = vsub.f32 %v48, %v273
    %275 = vmatmul.mubr.f32.gmra.mrb[0].mxu0 %v274
    %v276 = vpop.f32.mrb[0].mxu0
    %v277 = vadd.f32 %v202, %v276
    %v278 = vpop.f32.mrb[0].mxu0
    %v279 = vadd.f32 %v204, %v278
    %280 = vdwg.mxu0
    %281 = vmatprep.subr.mxu0 %v45
    %282 = vmatpush1.msra.mxu0 %v44
    %283 = vmatprep.subr.mxu0 0.0
    %284 = vmatpush1.msra.mxu0 0.0
    %285 = vmatprep.subr.mxu0 0.0
    %286 = vmatpush1.msra.mxu0 0.0
    %287 = vmatprep.subr.mxu0 0.0
    %288 = vmatpush1.msra.mxu0 0.0
    %289 = vmatprep.subr.mxu0 0.0
    %290 = vmatpush1.msra.mxu0 0.0
    %291 = vmatprep.subr.mxu0 0.0
    %292 = vmatpush1.msra.mxu0 0.0
    %293 = vmatprep.subr.mxu0 0.0
    %294 = vmatpush1.msra.mxu0 0.0
    %295 = vmatprep.subr.mxu0 0.0
    %296 = vmatpush1.msra.mxu0 0.0
    %297 = vmatprep.subr.mxu0 0.0
    %298 = vmatpush1.msra.mxu0 0.0
    %299 = vmatprep.subr.mxu0 0.0
    %300 = vmatpush1.msra.mxu0 0.0
    %301 = vmatprep.subr.mxu0 0.0
    %302 = vmatpush1.msra.mxu0 0.0
    %303 = vmatprep.subr.mxu0 0.0
    %304 = vmatpush1.msra.mxu0 0.0
    %305 = vmatprep.subr.mxu0 0.0
    %306 = vmatpush1.msra.mxu0 0.0
    %307 = vmatprep.subr.mxu0 0.0
    %308 = vmatpush1.msra.mxu0 0.0
    %309 = vmatprep.subr.mxu0 0.0
    %310 = vmatpush1.msra.mxu0 0.0
    %311 = vmatprep.subr.mxu0 0.0
    %312 = vmatpush1.msra.mxu0 0.0
    %313 = vmatprep.subr.mxu0 0.0
    %314 = vmatpush1.msra.mxu0 0.0
    %315 = vmatprep.subr.mxu0 0.0
    %316 = vmatpush1.msra.mxu0 0.0
    %317 = vmatprep.subr.mxu0 0.0
    %318 = vmatpush1.msra.mxu0 0.0
    %319 = vmatprep.subr.mxu0 0.0
    %320 = vmatpush1.msra.mxu0 0.0
    %321 = vmatprep.subr.mxu0 0.0
    %322 = vmatpush1.msra.mxu0 0.0
    %323 = vmatprep.subr.mxu0 0.0
    %324 = vmatpush1.msra.mxu0 0.0
    %325 = vmatprep.subr.mxu0 0.0
    %326 = vmatpush1.msra.mxu0 0.0
    %327 = vmatprep.subr.mxu0 0.0
    %328 = vmatpush1.msra.mxu0 0.0
    %329 = vmatprep.subr.mxu0 0.0
    %330 = vmatpush1.msra.mxu0 0.0
    %331 = vmatprep.subr.mxu0 0.0
    %332 = vmatpush1.msra.mxu0 0.0
    %333 = vmatprep.subr.mxu0 0.0
    %334 = vmatpush1.msra.mxu0 0.0
    %335 = vmatprep.subr.mxu0 0.0
    %336 = vmatpush1.msra.mxu0 0.0
    %337 = vmatprep.subr.mxu0 0.0
    %338 = vmatpush1.msra.mxu0 0.0
    %339 = vmatprep.subr.mxu0 0.0
    %340 = vmatpush1.msra.mxu0 0.0
    %341 = vmatprep.subr.mxu0 0.0
    %342 = vmatpush1.msra.mxu0 0.0
    %343 = vmatprep.subr.mxu0 0.0
    %344 = vmatpush1.msra.mxu0 0.0
    %345 = vmatprep.mubr.f32.mxu0 0.0
    %v346 = vand.u32 %v48, 4294901760
    %v347 = vsub.f32 %v48, %v346
    %v348 = vand.u32 %v347, 4294901760
    %349 = vmatmul.mubr.f32.gmra.mrb[0].mxu0 %v348
    %v350 = vpop.f32.mrb[0].mxu0
    %v351 = vadd.f32 %v277, %v350
    %v352 = vpop.f32.mrb[0].mxu0
    %v353 = vadd.f32 %v279, %v352
    %354 = vdwg.mxu0
    %v355 = vsub.f32 %v45, %v45
    %v356 = vand.u32 %v355, 4294901760
    %357 = vmatprep.subr.mxu0 %v356
    %v358 = vsub.f32 %v44, %v44
    %v359 = vand.u32 %v358, 4294901760
    %360 = vmatpush1.msra.mxu0 %v359
    %361 = vmatprep.subr.mxu0 0.0
    %362 = vmatpush1.msra.mxu0 0.0
    %363 = vmatprep.subr.mxu0 0.0
    %364 = vmatpush1.msra.mxu0 0.0
    %365 = vmatprep.subr.mxu0 0.0
    %366 = vmatpush1.msra.mxu0 0.0
    %367 = vmatprep.subr.mxu0 0.0
    %368 = vmatpush1.msra.mxu0 0.0
    %369 = vmatprep.subr.mxu0 0.0
    %370 = vmatpush1.msra.mxu0 0.0
    %371 = vmatprep.subr.mxu0 0.0
    %372 = vmatpush1.msra.mxu0 0.0
    %373 = vmatprep.subr.mxu0 0.0
    %374 = vmatpush1.msra.mxu0 0.0
    %375 = vmatprep.subr.mxu0 0.0
    %376 = vmatpush1.msra.mxu0 0.0
    %377 = vmatprep.subr.mxu0 0.0
    %378 = vmatpush1.msra.mxu0 0.0
    %379 = vmatprep.subr.mxu0 0.0
    %380 = vmatpush1.msra.mxu0 0.0
    %381 = vmatprep.subr.mxu0 0.0
    %382 = vmatpush1.msra.mxu0 0.0
    %383 = vmatprep.subr.mxu0 0.0
    %384 = vmatpush1.msra.mxu0 0.0
    %385 = vmatprep.subr.mxu0 0.0
    %386 = vmatpush1.msra.mxu0 0.0
    %387 = vmatprep.subr.mxu0 0.0
    %388 = vmatpush1.msra.mxu0 0.0
    %389 = vmatprep.subr.mxu0 0.0
    %390 = vmatpush1.msra.mxu0 0.0
    %391 = vmatprep.subr.mxu0 0.0
    %392 = vmatpush1.msra.mxu0 0.0
    %393 = vmatprep.subr.mxu0 0.0
    %394 = vmatpush1.msra.mxu0 0.0
    %395 = vmatprep.subr.mxu0 0.0
    %396 = vmatpush1.msra.mxu0 0.0
    %397 = vmatprep.subr.mxu0 0.0
    %398 = vmatpush1.msra.mxu0 0.0
    %399 = vmatprep.subr.mxu0 0.0
    %400 = vmatpush1.msra.mxu0 0.0
    %401 = vmatprep.subr.mxu0 0.0
    %402 = vmatpush1.msra.mxu0 0.0
    %403 = vmatprep.subr.mxu0 0.0
    %404 = vmatpush1.msra.mxu0 0.0
    %405 = vmatprep.subr.mxu0 0.0
    %406 = vmatpush1.msra.mxu0 0.0
    %407 = vmatprep.subr.mxu0 0.0
    %408 = vmatpush1.msra.mxu0 0.0
    %409 = vmatprep.subr.mxu0 0.0
    %410 = vmatpush1.msra.mxu0 0.0
    %411 = vmatprep.subr.mxu0 0.0
    %412 = vmatpush1.msra.mxu0 0.0
    %413 = vmatprep.subr.mxu0 0.0
    %414 = vmatpush1.msra.mxu0 0.0
    %415 = vmatprep.subr.mxu0 0.0
    %416 = vmatpush1.msra.mxu0 0.0
    %417 = vmatprep.subr.mxu0 0.0
    %418 = vmatpush1.msra.mxu0 0.0
    %419 = vmatprep.subr.mxu0 0.0
    %420 = vmatpush1.msra.mxu0 0.0
    %421 = vmatprep.subr.mxu0 0.0
    %422 = vmatpush1.msra.mxu0 0.0
    %423 = vmatprep.mubr.f32.mxu0 0.0
    %v424 = vand.u32 %v48, 4294901760
    %425 = vmatmul.mubr.f32.gmra.mrb[0].mxu0 %v424
    %v426 = vpop.f32.mrb[0].mxu0
    %v427 = vadd.f32 %v351, %v426
    %v428 = vpop.f32.mrb[0].mxu0
    %v429 = vadd.f32 %v353, %v428
    %430 = vdwg.mxu0
    %431 = vmatprep.subr.mxu0 %v45
    %432 = vmatpush1.msra.mxu0 %v44
    %433 = vmatprep.subr.mxu0 0.0
    %434 = vmatpush1.msra.mxu0 0.0
    %435 = vmatprep.subr.mxu0 0.0
    %436 = vmatpush1.msra.mxu0 0.0
    %437 = vmatprep.subr.mxu0 0.0
    %438 = vmatpush1.msra.mxu0 0.0
    %439 = vmatprep.subr.mxu0 0.0
    %440 = vmatpush1.msra.mxu0 0.0
    %441 = vmatprep.subr.mxu0 0.0
    %442 = vmatpush1.msra.mxu0 0.0
    %443 = vmatprep.subr.mxu0 0.0
    %444 = vmatpush1.msra.mxu0 0.0
    %445 = vmatprep.subr.mxu0 0.0
    %446 = vmatpush1.msra.mxu0 0.0
    %447 = vmatprep.subr.mxu0 0.0
    %448 = vmatpush1.msra.mxu0 0.0
    %449 = vmatprep.subr.mxu0 0.0
    %450 = vmatpush1.msra.mxu0 0.0
    %451 = vmatprep.subr.mxu0 0.0
    %452 = vmatpush1.msra.mxu0 0.0
    %453 = vmatprep.subr.mxu0 0.0
    %454 = vmatpush1.msra.mxu0 0.0
    %455 = vmatprep.subr.mxu0 0.0
    %456 = vmatpush1.msra.mxu0 0.0
    %457 = vmatprep.subr.mxu0 0.0
    %458 = vmatpush1.msra.mxu0 0.0
    %459 = vmatprep.subr.mxu0 0.0
    %460 = vmatpush1.msra.mxu0 0.0
    %461 = vmatprep.subr.mxu0 0.0
    %462 = vmatpush1.msra.mxu0 0.0
    %463 = vmatprep.subr.mxu0 0.0
    %464 = vmatpush1.msra.mxu0 0.0
    %465 = vmatprep.subr.mxu0 0.0
    %466 = vmatpush1.msra.mxu0 0.0
    %467 = vmatprep.subr.mxu0 0.0
    %468 = vmatpush1.msra.mxu0 0.0
    %469 = vmatprep.subr.mxu0 0.0
    %470 = vmatpush1.msra.mxu0 0.0
    %471 = vmatprep.subr.mxu0 0.0
    %472 = vmatpush1.msra.mxu0 0.0
    %473 = vmatprep.subr.mxu0 0.0
    %474 = vmatpush1.msra.mxu0 0.0
    %475 = vmatprep.subr.mxu0 0.0
    %476 = vmatpush1.msra.mxu0 0.0
    %477 = vmatprep.subr.mxu0 0.0
    %478 = vmatpush1.msra.mxu0 0.0
    %479 = vmatprep.subr.mxu0 0.0
    %480 = vmatpush1.msra.mxu0 0.0
    %481 = vmatprep.subr.mxu0 0.0
    %482 = vmatpush1.msra.mxu0 0.0
    %483 = vmatprep.subr.mxu0 0.0
    %484 = vmatpush1.msra.mxu0 0.0
    %485 = vmatprep.subr.mxu0 0.0
    %486 = vmatpush1.msra.mxu0 0.0
    %487 = vmatprep.subr.mxu0 0.0
    %488 = vmatpush1.msra.mxu0 0.0
    %489 = vmatprep.subr.mxu0 0.0
    %490 = vmatpush1.msra.mxu0 0.0
    %491 = vmatprep.subr.mxu0 0.0
    %492 = vmatpush1.msra.mxu0 0.0
    %493 = vmatprep.subr.mxu0 0.0
    %494 = vmatpush1.msra.mxu0 0.0
    %495 = vmatprep.mubr.f32.mxu0 0.0
    %v496 = vand.u32 %v48, 4294901760
    %497 = vmatmul.mubr.f32.gmra.mrb[0].mxu0 %v496
    %v498 = vpop.f32.mrb[0].mxu0
    %v499 = vadd.f32 %v427, %v498
    %v500 = vpop.f32.mrb[0].mxu0
    %v501 = vadd.f32 %v429, %v500
    %502 = vdwg.mxu0
    %v503 = vld [vmem:[%s2] sm:$0x3]
    %v505 = vlaneseq
    %v506 = vshrl.u32 %v505, 7
    %v507 = vsub.s32 0, %v506
    %v508 = vrot.slane %v503, %v507
    %v509 = vlaneseq
    %v510 = vshrl.u32 %v509, 7
    %v511 = vsub.s32 1, %v510
    %v512 = vrot.slane %v503, %v511
    %v515 = vmul.f32 %v499, %v508
    %v516 = vmul.f32 %v501, %v512
    %v517 = vld [vmem:[%s3] sm:$0x3]
    %v519 = vlaneseq
    %v520 = vshrl.u32 %v519, 7
    %v521 = vsub.s32 0, %v520
    %v522 = vrot.slane %v517, %v521
    %v523 = vlaneseq
    %v524 = vshrl.u32 %v523, 7
    %v525 = vsub.s32 1, %v524
    %v526 = vrot.slane %v517, %v525
    %v529 = vadd.f32 %v515, %v522
    %v530 = vadd.f32 %v516, %v526
    %v533 = vcombine.low %v529, %v530
    %535 = vst [vmem:[#allocation7] sm:$0xff] %v533
    // Predicated region
    $region26: #{tpu_custom_call.1} parent=1 // pred_check
      _
    $region27: #{tpu_custom_call.1} parent=1 // pred_check_branch
      %537 = sbr.rel (0) target = $region29
    $region28: #{tpu_custom_call.1} parent=1 // pred_region
      %s539 = ssub.s32 128, 128
      %540 = vsyncadd [#allocation4], %s539
      %s542 = sshll.u32 [#allocation7], 4
      %s543 = int_to_ptr.vmem [resolvable:$true] %s542
      %545 = dma.vmem_to_hbm [thread:$0]  %s543, 128, %s4, [#allocation4]
    $region29: #{tpu_custom_call.1} parent=1 // pred_fallthru
      _
    // Predicated region
    $region30: #{tpu_custom_call.1} parent=1 // pred_check
      _
    $region31: #{tpu_custom_call.1} parent=1 // pred_check_branch
      %547 = sbr.rel (0) target = $region33
    $region32: #{tpu_custom_call.1} parent=1 // pred_region
      %548 = dma.done [#allocation4], 128
    $region33: #{tpu_custom_call.1} parent=1 // pred_fallthru
      _
    %549 = vsyncpa [#allocation3], 1
    %550 = vsyncpa [#allocation6], 1
    %551 = vsyncpa [#allocation4], 1

</llo_original>
